<compile_context>
chip_gen: v7x
topology: tpu7x:2x2x1
jax: 0.10.0
libtpu: 0.0.40
codegen_flags: <defaults>
</compile_context>

<pallas_src>
import jax
import jax.numpy as jnp
from jax.experimental import pallas as pl
from jax.experimental.pallas import tpu as pltpu


def linear_kernel(x_ref, w_ref, b_ref, out_ref):
    # x_ref: (tb, F) ; w_ref: (F, C) ; b_ref: (1, C) ; out_ref: (tb, C)
    out_ref[...] = (
        jnp.dot(x_ref[...], w_ref[...], preferred_element_type=jnp.float32)
        + b_ref[...]
    ).astype(out_ref.dtype)


def _round_up(x, m):
    return -(-x // m) * m


def fb_freq_forward(vecs, weight, bias, *, block_b=1024):
    """FB_freq forward: vecs (B, 5) float -> (B, 2).

    weight: (2, 5) PyTorch-layout Linear weight; bias: (2,).
    """
    B, F = vecs.shape
    C = weight.shape[0]

    x = vecs.astype(jnp.float32)
    w = jnp.transpose(weight).astype(jnp.float32)   # (F, C) = (5, 2); tiny, fusible
    b = bias.reshape(1, C).astype(jnp.float32)      # (1, 2)

    # Batch tile: must be a multiple of 8 sublanes unless it equals the full
    # batch dim.  Keep block_b a multiple of 8 for robustness.
    block_b = max(8, _round_up(block_b, 8))
    if B > block_b:
        tb = block_b                                # large batch: 1024-row tiles
    elif B >= 256:
        tb = _round_up(pl.cdiv(B, 2), 8)            # >=2 tiles so v7x megacore engages
    else:
        tb = B                                      # single block == full array dims
    grid = pl.cdiv(B, tb)

    return pl.pallas_call(
        linear_kernel,
        out_shape=jax.ShapeDtypeStruct((B, C), jnp.float32),
        grid=(grid,),
        in_specs=[
            pl.BlockSpec((tb, F), lambda i: (i, 0)),  # activations, tiled over batch
            pl.BlockSpec((F, C), lambda i: (0, 0)),   # (5, 2) weight, VMEM-resident
            pl.BlockSpec((1, C), lambda i: (0, 0)),   # (1, 2) bias, VMEM-resident
        ],
        out_specs=pl.BlockSpec((tb, C), lambda i: (i, 0)),
        compiler_params=pltpu.CompilerParams(
            dimension_semantics=("parallel",),
        ),
    )(x, w, b)


def _reference_forward(vecs, weight, bias):
    # Pure-JAX mirror of the PyTorch forward: nn.Linear(5, 2)
    return (
        vecs.astype(jnp.float32) @ weight.T.astype(jnp.float32)
        + bias.astype(jnp.float32)
    )


if __name__ == "__main__":
    # Small shapes implied by the module: Linear(5, 2), batch = 2.
    B, F, C = 2, 5, 2

    key = jax.random.PRNGKey(0)
    k_x, k_w, k_b = jax.random.split(key, 3)
    vecs = jax.random.normal(k_x, (B, F), jnp.float32)
    weight = 0.3 * jax.random.normal(k_w, (C, F), jnp.float32)   # PyTorch (out, in) layout
    bias = 0.1 * jax.random.normal(k_b, (C,), jnp.float32)

    out = fb_freq_forward(vecs, weight, bias)
    jax.block_until_ready(out)

    ref = _reference_forward(vecs, weight, bias)
    assert out.shape == (B, C), out.shape
    assert jnp.allclose(out, ref, atol=1e-5, rtol=1e-5), (out, ref)
    print("KERNEL_OK")
</pallas_src>

<mosaic_0001>
module attributes {stable_mosaic.version = 11 : i64} {
  func.func @linear_kernel(%arg0: i32, %arg1: memref<2x5xf32, #tpu.memory_space<vmem>>, %arg2: memref<5x2xf32, #tpu.memory_space<vmem>>, %arg3: memref<1x2xf32, #tpu.memory_space<vmem>>, %arg4: memref<2x2xf32, #tpu.memory_space<vmem>>) attributes {dimension_semantics = [#tpu.dimension_semantics<parallel>], iteration_bounds = array<i64: 1>, scalar_prefetch = 0 : i64, scratch_operands = 0 : i64, tpu.core_type = #tpu.core_type<tc>, window_params = [{transform_indices = @transform_0, window_bounds = array<i64: 2, 5>}, {pipeline_mode = #tpu.pipeline_mode<synchronous>, transform_indices = @transform_1, window_bounds = array<i64: 5, 2>}, {pipeline_mode = #tpu.pipeline_mode<synchronous>, transform_indices = @transform_2, window_bounds = array<i64: 1, 2>}, {transform_indices = @transform_3, window_bounds = array<i64: 2, 2>}]} {
    %c0 = arith.constant 0 : index
    %c0_0 = arith.constant 0 : index
    %0 = vector.load %arg1[%c0, %c0_0] : memref<2x5xf32, #tpu.memory_space<vmem>>, vector<2x5xf32>
    %c0_1 = arith.constant 0 : index
    %c0_2 = arith.constant 0 : index
    %1 = vector.load %arg2[%c0_1, %c0_2] : memref<5x2xf32, #tpu.memory_space<vmem>>, vector<5x2xf32>
    %cst = arith.constant dense<0.000000e+00> : vector<2x2xf32>
    %2 = tpu.matmul %0, %1, %cst {dimension_numbers = #tpu.dot_dimension_numbers<[1], [0], [0], [1], [0, 0, 1, 1], [], []>} : vector<2x5xf32>, vector<5x2xf32>, vector<2x2xf32> -> vector<2x2xf32>
    %c0_3 = arith.constant 0 : index
    %c0_4 = arith.constant 0 : index
    %3 = vector.load %arg3[%c0_3, %c0_4] : memref<1x2xf32, #tpu.memory_space<vmem>>, vector<1x2xf32>
    %4 = vector.broadcast %3 : vector<1x2xf32> to vector<2x2xf32>
    %5 = arith.addf %2, %4 : vector<2x2xf32>
    %c0_5 = arith.constant 0 : index
    %c0_6 = arith.constant 0 : index
    %6 = vector.load %arg4[%c0_5, %c0_6] : memref<2x2xf32, #tpu.memory_space<vmem>>, vector<2x2xf32>
    tpu.vector_store %arg4[%c0_5, %c0_6], %5 {strides = array<i32>} : memref<2x2xf32, #tpu.memory_space<vmem>>, vector<2x2xf32>,
    return
  }
  func.func @transform_0(%arg0: i32) -> (i32, i32) {
    %c0_i32 = arith.constant 0 : i32
    %c0_i32_0 = arith.constant 0 : i32
    return %arg0, %c0_i32 : i32, i32
  }
  func.func @transform_1(%arg0: i32) -> (i32, i32) {
    %c0_i32 = arith.constant 0 : i32
    %c0_i32_0 = arith.constant 0 : i32
    %c0_i32_1 = arith.constant 0 : i32
    return %c0_i32, %c0_i32_0 : i32, i32
  }
  func.func @transform_2(%arg0: i32) -> (i32, i32) {
    %c0_i32 = arith.constant 0 : i32
    %c0_i32_0 = arith.constant 0 : i32
    %c0_i32_1 = arith.constant 0 : i32
    return %c0_i32, %c0_i32_0 : i32, i32
  }
  func.func @transform_3(%arg0: i32) -> (i32, i32) {
    %c0_i32 = arith.constant 0 : i32
    %c0_i32_0 = arith.constant 0 : i32
    return %arg0, %c0_i32 : i32, i32
  }
}

</mosaic_0001>

<llo_original>
// kernel: tpu_custom_call.1
$region0: #{tpu_custom_call.1}
  #allocation0 [shape = 'u32[]', space=smem, size = 0x4, offset = 0x4, fixed_abs, tag = 'smem constant byte address 0x4 - core index']
  #allocation1 [shape = 'u32[144,128]{1,0:T(1,128)}', space=vmem, size = 0x12000, scoped, tag = 'internal scratch']
  %s0 = inlined_call_operand.vmem [shape: f32[2,5], index: 0, kind: input, shape index: {}]
  %s1 = inlined_call_operand.vmem [shape: f32[5,2], index: 1, kind: input, shape index: {}]
  %s2 = inlined_call_operand.vmem [shape: f32[1,2], index: 2, kind: input, shape index: {}]
  %s3 = inlined_call_operand.hbm [shape: f32[2,2], index: 3, kind: output, shape index: {}]
  %s4 = sld [smem:[#allocation0]]
  $region22: #{tpu_custom_call.1} parent=0
    _
  %s6 = ssub.s32 1, %s4
  %s7 = scalar_select 0, %s6, %s4
  $region1: #{tpu_custom_call.1} parent=0
    #allocation2 [shape = 'u8[1024]{0}', space=vmem, size = 0x400, scoped, tag = 'output window, operand 0, single buffered']
    #allocation3 [shape = 's32[1]{0}', space=sflag, size = 0x4, scoped, tag = 'scoped memory for tpu_custom_call.1']
    %8 = vsyncpa [#allocation3], 0
    // Predicated region
    $region2: #{tpu_custom_call.1} parent=1 // pred_check
      _
    $region3: #{tpu_custom_call.1} parent=1 // pred_check_branch
      %10 = sbr.rel (0) target = $region5
    $region4: #{tpu_custom_call.1} parent=1 // pred_region
      _
    $region5: #{tpu_custom_call.1} parent=1 // pred_fallthru
      _
    // Predicated region
    $region6: #{tpu_custom_call.1} parent=1 // pred_check
      _
    $region7: #{tpu_custom_call.1} parent=1 // pred_check_branch
      %12 = sbr.rel (0) target = $region9
    $region8: #{tpu_custom_call.1} parent=1 // pred_region
      _
    $region9: #{tpu_custom_call.1} parent=1 // pred_fallthru
      _
    // Predicated region
    $region10: #{tpu_custom_call.1} parent=1 // pred_check
      _
    $region11: #{tpu_custom_call.1} parent=1 // pred_check_branch
      %14 = sbr.rel (0) target = $region13
    $region12: #{tpu_custom_call.1} parent=1 // pred_region
      _
    $region13: #{tpu_custom_call.1} parent=1 // pred_fallthru
      _
    %v15 = vld [vmem:[%s0] sm:$0x3]
    %v16 = vld [vmem:[%s1] sm:$0x1f]
    %v17 = vld [vmem:[%s2] sm:$0x1]
    %v19 = vlaneseq
    %v20 = vshrl.u32 %v19, 7
    %v21 = vsub.s32 0, %v20
    %v22 = vrot.slane %v17, %v21
    %vm24 = vcmask 39936
    %v26 = vsel %vm24, %v15, 0
    %vm28 = vcmask 1044480
    %v30 = vsel %vm28, %v16, 0
    %32 = vmatprep.subr.mxu0 0.0
    %33 = vmatpush1.msra.mxu0 %v30
    %34 = vmatprep.subr.mxu0 0.0
    %35 = vmatpush1.msra.mxu0 0.0
    %36 = vmatprep.subr.mxu0 0.0
    %37 = vmatpush1.msra.mxu0 0.0
    %38 = vmatprep.subr.mxu0 0.0
    %39 = vmatpush1.msra.mxu0 0.0
    %40 = vmatprep.subr.mxu0 0.0
    %41 = vmatpush1.msra.mxu0 0.0
    %42 = vmatprep.subr.mxu0 0.0
    %43 = vmatpush1.msra.mxu0 0.0
    %44 = vmatprep.subr.mxu0 0.0
    %45 = vmatpush1.msra.mxu0 0.0
    %46 = vmatprep.subr.mxu0 0.0
    %47 = vmatpush1.msra.mxu0 0.0
    %48 = vmatprep.subr.mxu0 0.0
    %49 = vmatpush1.msra.mxu0 0.0
    %50 = vmatprep.subr.mxu0 0.0
    %51 = vmatpush1.msra.mxu0 0.0
    %52 = vmatprep.subr.mxu0 0.0
    %53 = vmatpush1.msra.mxu0 0.0
    %54 = vmatprep.subr.mxu0 0.0
    %55 = vmatpush1.msra.mxu0 0.0
    %56 = vmatprep.subr.mxu0 0.0
    %57 = vmatpush1.msra.mxu0 0.0
    %58 = vmatprep.subr.mxu0 0.0
    %59 = vmatpush1.msra.mxu0 0.0
    %60 = vmatprep.subr.mxu0 0.0
    %61 = vmatpush1.msra.mxu0 0.0
    %62 = vmatprep.subr.mxu0 0.0
    %63 = vmatpush1.msra.mxu0 0.0
    %64 = vmatprep.subr.mxu0 0.0
    %65 = vmatpush1.msra.mxu0 0.0
    %66 = vmatprep.subr.mxu0 0.0
    %67 = vmatpush1.msra.mxu0 0.0
    %68 = vmatprep.subr.mxu0 0.0
    %69 = vmatpush1.msra.mxu0 0.0
    %70 = vmatprep.subr.mxu0 0.0
    %71 = vmatpush1.msra.mxu0 0.0
    %72 = vmatprep.subr.mxu0 0.0
    %73 = vmatpush1.msra.mxu0 0.0
    %74 = vmatprep.subr.mxu0 0.0
    %75 = vmatpush1.msra.mxu0 0.0
    %76 = vmatprep.subr.mxu0 0.0
    %77 = vmatpush1.msra.mxu0 0.0
    %78 = vmatprep.subr.mxu0 0.0
    %79 = vmatpush1.msra.mxu0 0.0
    %80 = vmatprep.subr.mxu0 0.0
    %81 = vmatpush1.msra.mxu0 0.0
    %82 = vmatprep.subr.mxu0 0.0
    %83 = vmatpush1.msra.mxu0 0.0
    %84 = vmatprep.subr.mxu0 0.0
    %85 = vmatpush1.msra.mxu0 0.0
    %86 = vmatprep.subr.mxu0 0.0
    %87 = vmatpush1.msra.mxu0 0.0
    %88 = vmatprep.subr.mxu0 0.0
    %89 = vmatpush1.msra.mxu0 0.0
    %90 = vmatprep.subr.mxu0 0.0
    %91 = vmatpush1.msra.mxu0 0.0
    %92 = vmatprep.subr.mxu0 0.0
    %93 = vmatpush1.msra.mxu0 0.0
    %94 = vmatprep.subr.mxu0 0.0
    %95 = vmatpush1.msra.mxu0 0.0
    %96 = vmatprep.mubr.f32.mxu0 0.0
    %97 = vmatmul.mubr.f32.gmra.mrb[0].mxu0 %v26
    %v98 = vpop.f32.mrb[0].mxu0
    %v99 = vadd.f32 %v22, %v98
    %v100 = vpop.f32.mrb[0].mxu0
    %101 = vdwg.mxu0
    %vm102 = vcmask 9216
    %103 = vst.msk [vmem:[#allocation2] sm:$0x3] %vm102, %v99
    // Predicated region
    $region14: #{tpu_custom_call.1} parent=1 // pred_check
      _
    $region15: #{tpu_custom_call.1} parent=1 // pred_check_branch
      %105 = sbr.rel (0) target = $region17
    $region16: #{tpu_custom_call.1} parent=1 // pred_region
      %s107 = ssub.s32 32, 32
      %108 = vsyncadd [#allocation3], %s107
      %s110 = sshll.u32 [#allocation2], 4
      %s111 = int_to_ptr.vmem [resolvable:$true] %s110
      %113 = dma.vmem_to_hbm [thread:$0]  %s111, 32, %s3, [#allocation3]
    $region17: #{tpu_custom_call.1} parent=1 // pred_fallthru
      _
    // Predicated region
    $region18: #{tpu_custom_call.1} parent=1 // pred_check
      _
    $region19: #{tpu_custom_call.1} parent=1 // pred_check_branch
      %115 = sbr.rel (0) target = $region21
    $region20: #{tpu_custom_call.1} parent=1 // pred_region
      %116 = dma.done [#allocation3], 32
    $region21: #{tpu_custom_call.1} parent=1 // pred_fallthru
      _
    %117 = vsyncpa [#allocation3], 1

</llo_original>
